<compile_context>
chip_gen: v5e
topology: v5e:2x2
jax: 0.10.0
libtpu: 0.0.40
codegen_flags: <defaults>
</compile_context>

<pallas_src>
from typing import NamedTuple

import jax
import jax.numpy as jnp
from jax.experimental import pallas as pl
from jax.experimental.pallas import tpu as pltpu


def _round_up(x: int, m: int) -> int:
    return ((x + m - 1) // m) * m


def _cdiv(a: int, b: int) -> int:
    return -(-a // b)


# ----------------------------------------------------------------------------
# Hardware-aware defaults
# ----------------------------------------------------------------------------
class _HW(NamedTuple):
    vmem_budget: int   # bytes we allow the kernel tiles to occupy
    vmem_phys: int     # physical VMEM bytes (cap for vmem_limit_bytes)
    multi_core: bool   # >1 TensorCore per chip (megacore sharding useful)
    tm: int            # default row tile
    tff: int           # default d_ff tile for the streaming path


def _hw_params() -> _HW:
    kind = ""
    try:
        kind = jax.devices()[0].device_kind.lower()
    except Exception:
        pass
    vmem_phys = None
    try:
        vmem_phys = int(pltpu.get_tpu_info().vmem_capacity_bytes)
    except Exception:
        vmem_phys = None

    is_v5e = ("v5 lite" in kind) or ("v5e" in kind) or ("v5lite" in kind)
    is_v6 = ("v6" in kind) or ("trillium" in kind)
    is_v7 = ("7x" in kind) or ("v7" in kind)

    if vmem_phys is None:
        vmem_phys = 128 * 1024 * 1024 if (is_v5e or is_v6) else 64 * 1024 * 1024

    if vmem_phys >= 100 * 1024 * 1024:
        # v5e / v6e: 128 MiB physical -> use ~96 MiB (don't cap at 64 MiB)
        budget = 96 * 1024 * 1024
    else:
        # v7x: 64 MiB physical -> budget ~48 MiB, leave room for Mosaic scratch
        budget = max(int(vmem_phys * 0.75), 24 * 1024 * 1024)

    if is_v5e:
        tm, tff = 256, 2048     # v5e: tm=256 is already past the roofline; grow tff
    elif is_v6:
        tm, tff = 512, 1024
    elif is_v7:
        tm, tff = 512, 512
    else:                       # unknown device -> conservative
        tm, tff = 256, 512

    multi_core = is_v7 or (" v4" in kind) or ("v5p" in kind)
    return _HW(budget, vmem_phys, multi_core, tm, tff)


# ----------------------------------------------------------------------------
# Kernels
# ----------------------------------------------------------------------------
def _ffn_resident_kernel(x_ref, w1_ref, b1_ref, w2_ref, b2_ref, o_ref):
    # Full W1/W2 are VMEM-resident (constant index maps); one row tile per step.
    h = jnp.dot(x_ref[...], w1_ref[...], preferred_element_type=jnp.float32)
    h = h + b1_ref[...]
    h = jnp.maximum(h, 0.01 * h)                       # leaky_relu(0.01)
    y = jnp.dot(h.astype(w2_ref.dtype), w2_ref[...],
                preferred_element_type=jnp.float32)
    o_ref[...] = (y + b2_ref[...]).astype(o_ref.dtype)


def _ffn_tiled_kernel_out_acc(x_ref, w1_ref, b1_ref, w2_ref, b2_ref, o_ref):
    # f32 output: accumulate the d_ff reduction directly in o_ref (its block
    # index is constant across j, so it stays VMEM-resident). No scratch.
    j = pl.program_id(1)
    h = jnp.dot(x_ref[...], w1_ref[...], preferred_element_type=jnp.float32)
    h = h + b1_ref[...]
    h = jnp.maximum(h, 0.01 * h)
    part = jnp.dot(h.astype(w2_ref.dtype), w2_ref[...],
                   preferred_element_type=jnp.float32)

    @pl.when(j == 0)
    def _init():
        o_ref[...] = part + b2_ref[...]

    @pl.when(j > 0)
    def _accum():
        o_ref[...] += part


def _ffn_tiled_kernel_scratch_acc(x_ref, w1_ref, b1_ref, w2_ref, b2_ref,
                                  o_ref, acc_ref):
    # Non-f32 output: f32 VMEM accumulator, bias fused into the init.
    j = pl.program_id(1)

    @pl.when(j == 0)
    def _init():
        acc_ref[...] = jnp.broadcast_to(b2_ref[...], acc_ref.shape)

    h = jnp.dot(x_ref[...], w1_ref[...], preferred_element_type=jnp.float32)
    h = h + b1_ref[...]
    h = jnp.maximum(h, 0.01 * h)
    acc_ref[...] += jnp.dot(h.astype(w2_ref.dtype), w2_ref[...],
                            preferred_element_type=jnp.float32)

    @pl.when(j == pl.num_programs(1) - 1)
    def _finalize():
        o_ref[...] = acc_ref[...].astype(o_ref.dtype)


# ----------------------------------------------------------------------------
# One-time parameter preparation (padding + bf16 cast out of the hot path)
# ----------------------------------------------------------------------------
def prepare_ffn_params(w1, b1, w2, b2):
    """Pad to lane-dense multiples of 128 and cast matmul weights to bf16 once."""
    d_model, d_ff = w1.shape
    d_model_p = _round_up(d_model, 128)
    d_ff_p = _round_up(d_ff, 128)

    def _pad2(a, rows, cols, dtype):
        a = jnp.asarray(a, dtype)
        if a.shape == (rows, cols):
            return a                     # no copy when already aligned
        out = jnp.zeros((rows, cols), dtype)
        return out.at[:a.shape[0], :a.shape[1]].set(a)

    w1_p = _pad2(w1, d_model_p, d_ff_p, jnp.bfloat16)
    b1_p = _pad2(jnp.asarray(b1).reshape(1, -1), 1, d_ff_p, jnp.float32)
    w2_p = _pad2(w2, d_ff_p, d_model_p, jnp.bfloat16)
    b2_p = _pad2(jnp.asarray(b2).reshape(1, -1), 1, d_model_p, jnp.float32)
    return w1_p, b1_p, w2_p, b2_p


# ----------------------------------------------------------------------------
# Wrapper
# ----------------------------------------------------------------------------
def feed_forward(x, w1_p, b1_p, w2_p, b2_p, d_model=None, *, out_dtype=None):
    """x: (N, d_model). w1_p/b1_p/w2_p/b2_p: padded params from prepare_ffn_params."""
    N, d_model_in = x.shape
    d_model = d_model if d_model is not None else d_model_in
    assert d_model_in == d_model
    d_model_p, d_ff_p = w1_p.shape
    out_dtype = jnp.dtype(out_dtype if out_dtype is not None else x.dtype)
    out_isz = out_dtype.itemsize

    hw = _hw_params()
    vmem_budget, vmem_phys = hw.vmem_budget, hw.vmem_phys

    # ---- row tile ----------------------------------------------------------
    tm_eff = max(8, min(hw.tm, _round_up(N, 8)))
    # Megacore guard (v7x/v4/v5p only): keep >=2 row tiles when there is
    # enough work, but never shrink tm below 256.
    if hw.multi_core and N > 512 and _cdiv(N, tm_eff) < 2:
        tm_eff = max(256, _round_up(_cdiv(N, 2), 8))

    # ---- weights-resident fast path check ----------------------------------
    resident_bytes = (
        2 * d_model_p * d_ff_p * 2            # W1 bf16 (double-buffer allowance)
        + 2 * d_ff_p * d_model_p * 2          # W2 bf16
        + 2 * 8 * d_ff_p * 4                  # b1 f32 (sublane-padded)
        + 2 * 8 * d_model_p * 4               # b2 f32
        + 2 * tm_eff * d_model_p * 2          # x tile bf16, double-buffered
        + 2 * tm_eff * d_model_p * out_isz    # out tile, double-buffered
        + tm_eff * d_ff_p * (4 + 2)           # h intermediate (f32 + bf16 copy)
    )
    use_resident = resident_bytes <= vmem_budget

    # ---- streaming path tile selection (only if needed) --------------------
    if not use_resident:
        def tiled_bytes(tff):
            return (
                2 * tm_eff * d_model_p * 2          # x tile
                + 2 * d_model_p * tff * 2            # W1 tile
                + 2 * tff * d_model_p * 2            # W2 tile
                + 2 * 8 * tff * 4                    # b1 tile
                + 2 * 8 * d_model_p * 4              # b2 tile
                + 2 * tm_eff * d_model_p * out_isz   # out tile
                + tm_eff * d_model_p * 4             # f32 accumulator (worst case)
                + tm_eff * tff * (4 + 2)             # h intermediate
            )

        # Last resort: shrink the row tile only if even tff=128 doesn't fit.
        while tiled_bytes(128) > vmem_budget and tm_eff > 64:
            tm_eff = max(64, _round_up(tm_eff // 2, 8))

        # Largest multiple-of-128 divisor of d_ff_p that is <= desired and fits.
        q = d_ff_p // 128
        desired = max(128, min(hw.tff, d_ff_p))
        tff_eff = 128
        for mult in range(q, 0, -1):
            cand = mult * 128
            if q % mult == 0 and cand <= desired and tiled_bytes(cand) <= vmem_budget:
                tff_eff = cand
                break

    N_p = _round_up(N, tm_eff)

    # ---- per-call x padding / bf16 cast (skip copy when already aligned) ---
    x_bf = x.astype(jnp.bfloat16)
    if (N_p, d_model_p) != (N, d_model):
        xp = jnp.zeros((N_p, d_model_p), jnp.bfloat16).at[:N, :d_model].set(x_bf)
    else:
        xp = x_bf

    vmem_cap = max(16 * 1024 * 1024, vmem_phys - 4 * 1024 * 1024)

    if use_resident:
        vmem_limit = int(min(max(resident_bytes + (16 << 20), 16 << 20), vmem_cap))
        out_p = pl.pallas_call(
            _ffn_resident_kernel,
            out_shape=jax.ShapeDtypeStruct((N_p, d_model_p), out_dtype),
            grid_spec=pltpu.PrefetchScalarGridSpec(
                num_scalar_prefetch=0,
                grid=(N_p // tm_eff,),
                in_specs=[
                    pl.BlockSpec((tm_eff, d_model_p), lambda i: (i, 0)),      # x
                    pl.BlockSpec((d_model_p, d_ff_p), lambda i: (0, 0)),      # W1
                    pl.BlockSpec((1, d_ff_p), lambda i: (0, 0)),              # b1
                    pl.BlockSpec((d_ff_p, d_model_p), lambda i: (0, 0)),      # W2
                    pl.BlockSpec((1, d_model_p), lambda i: (0, 0)),           # b2
                ],
                out_specs=pl.BlockSpec((tm_eff, d_model_p), lambda i: (i, 0)),
            ),
            compiler_params=pltpu.CompilerParams(
                dimension_semantics=("parallel",),
                vmem_limit_bytes=vmem_limit),
        )(xp, w1_p, b1_p, w2_p, b2_p)
    else:
        acc_in_out = out_dtype == jnp.dtype(jnp.float32)
        kernel = (_ffn_tiled_kernel_out_acc if acc_in_out
                  else _ffn_tiled_kernel_scratch_acc)
        scratch = ([] if acc_in_out
                   else [pltpu.VMEM((tm_eff, d_model_p), jnp.float32)])
        vmem_limit = int(min(max(tiled_bytes(tff_eff) + (8 << 20), 16 << 20),
                             vmem_cap))
        out_p = pl.pallas_call(
            kernel,
            out_shape=jax.ShapeDtypeStruct((N_p, d_model_p), out_dtype),
            grid_spec=pltpu.PrefetchScalarGridSpec(
                num_scalar_prefetch=0,
                grid=(N_p // tm_eff, d_ff_p // tff_eff),
                in_specs=[
                    pl.BlockSpec((tm_eff, d_model_p), lambda i, j: (i, 0)),   # x
                    pl.BlockSpec((d_model_p, tff_eff), lambda i, j: (0, j)),  # W1
                    pl.BlockSpec((1, tff_eff), lambda i, j: (0, j)),          # b1
                    pl.BlockSpec((tff_eff, d_model_p), lambda i, j: (j, 0)),  # W2
                    pl.BlockSpec((1, d_model_p), lambda i, j: (0, 0)),        # b2
                ],
                out_specs=pl.BlockSpec((tm_eff, d_model_p), lambda i, j: (i, 0)),
                scratch_shapes=scratch,
            ),
            compiler_params=pltpu.CompilerParams(
                dimension_semantics=("parallel", "arbitrary"),
                vmem_limit_bytes=vmem_limit),
        )(xp, w1_p, b1_p, w2_p, b2_p)

    if (N_p, d_model_p) != (N, d_model):
        out_p = out_p[:N, :d_model]
    return out_p


# ----------------------------------------------------------------------------
# Module port
# ----------------------------------------------------------------------------
class FeedForwardLayer:
    """JAX/Pallas port of the PyTorch FeedForwardLayer (Linear -> LeakyReLU -> Linear)."""

    def __init__(self, d_model: int, d_ff: int, key):
        k1, k2, k3, k4 = jax.random.split(key, 4)
        # Mimic nn.Linear's uniform(-1/sqrt(fan_in), 1/sqrt(fan_in)) init.
        bound1 = 1.0 / (d_model ** 0.5)
        bound2 = 1.0 / (d_ff ** 0.5)
        # Stored already transposed vs. nn.Linear: (in, out), f32 masters.
        self.w1 = jax.random.uniform(k1, (d_model, d_ff), jnp.float32, -bound1, bound1)
        self.b1 = jax.random.uniform(k2, (d_ff,), jnp.float32, -bound1, bound1)
        self.w2 = jax.random.uniform(k3, (d_ff, d_model), jnp.float32, -bound2, bound2)
        self.b2 = jax.random.uniform(k4, (d_model,), jnp.float32, -bound2, bound2)
        self.d_model = d_model
        self.d_ff = d_ff
        # One-time pad + bf16 cast (removed from the per-call path).
        self.w1_p, self.b1_p, self.w2_p, self.b2_p = prepare_ffn_params(
            self.w1, self.b1, self.w2, self.b2)

    def __call__(self, x):
        # x: (batch, seq, d_model)
        batch, seq, d_model = x.shape
        assert d_model == self.d_model
        x2d = x.reshape(batch * seq, d_model)
        y2d = feed_forward(x2d, self.w1_p, self.b1_p, self.w2_p, self.b2_p, d_model)
        return y2d.reshape(batch, seq, d_model)


def _reference(x, w1, b1, w2, b2):
    h = x @ w1 + b1
    h = jnp.where(h > 0, h, 0.01 * h)
    return h @ w2 + b2


if __name__ == "__main__":
    key = jax.random.PRNGKey(0)
    k_param, k_x = jax.random.split(key)

    batch, seq, d_model, d_ff = 2, 8, 32, 64
    layer = FeedForwardLayer(d_model, d_ff, k_param)

    x = jax.random.normal(k_x, (batch, seq, d_model), jnp.float32)

    y = jax.block_until_ready(layer(x))

    # Correctness vs. pure-f32 JAX reference (kernel uses bf16 MXU inputs with
    # f32 accumulation -> slightly looser tolerance).
    y_ref = _reference(x.reshape(-1, d_model), layer.w1, layer.b1,
                       layer.w2, layer.b2).reshape(batch, seq, d_model)
    assert y.shape == (batch, seq, d_model)
    err = float(jnp.max(jnp.abs(y - y_ref)))
    assert jnp.allclose(y, y_ref, atol=2e-2, rtol=2e-2), err

    print("KERNEL_OK")
</pallas_src>

<mosaic_0001>
module attributes {stable_mosaic.version = 11 : i64} {
  func.func @_ffn_resident_kernel(%arg0: i32, %arg1: memref<16x128xbf16, #tpu.memory_space<vmem>>, %arg2: memref<128x128xbf16, #tpu.memory_space<vmem>>, %arg3: memref<1x128xf32, #tpu.memory_space<vmem>>, %arg4: memref<128x128xbf16, #tpu.memory_space<vmem>>, %arg5: memref<1x128xf32, #tpu.memory_space<vmem>>, %arg6: memref<16x128xf32, #tpu.memory_space<vmem>>) attributes {dimension_semantics = [#tpu.dimension_semantics<parallel>], iteration_bounds = array<i64: 1>, scalar_prefetch = 0 : i64, scratch_operands = 0 : i64, tpu.core_type = #tpu.core_type<tc>, window_params = [{transform_indices = @transform_0, window_bounds = array<i64: 16, 128>}, {pipeline_mode = #tpu.pipeline_mode<synchronous>, transform_indices = @transform_1, window_bounds = array<i64: 128, 128>}, {pipeline_mode = #tpu.pipeline_mode<synchronous>, transform_indices = @transform_2, window_bounds = array<i64: 1, 128>}, {pipeline_mode = #tpu.pipeline_mode<synchronous>, transform_indices = @transform_3, window_bounds = array<i64: 128, 128>}, {pipeline_mode = #tpu.pipeline_mode<synchronous>, transform_indices = @transform_4, window_bounds = array<i64: 1, 128>}, {transform_indices = @transform_5, window_bounds = array<i64: 16, 128>}]} {
    %c0 = arith.constant 0 : index
    %c0_0 = arith.constant 0 : index
    %0 = vector.load %arg1[%c0, %c0_0] : memref<16x128xbf16, #tpu.memory_space<vmem>>, vector<16x128xbf16>
    %c0_1 = arith.constant 0 : index
    %c0_2 = arith.constant 0 : index
    %1 = vector.load %arg2[%c0_1, %c0_2] : memref<128x128xbf16, #tpu.memory_space<vmem>>, vector<128x128xbf16>
    %cst = arith.constant dense<0.000000e+00> : vector<16x128xf32>
    %2 = tpu.matmul %0, %1, %cst {dimension_numbers = #tpu.dot_dimension_numbers<[1], [0], [0], [1], [0, 0, 1, 1], [], []>} : vector<16x128xbf16>, vector<128x128xbf16>, vector<16x128xf32> -> vector<16x128xf32>
    %c0_3 = arith.constant 0 : index
    %c0_4 = arith.constant 0 : index
    %3 = vector.load %arg3[%c0_3, %c0_4] : memref<1x128xf32, #tpu.memory_space<vmem>>, vector<1x128xf32>
    %4 = vector.broadcast %3 : vector<1x128xf32> to vector<16x128xf32>
    %5 = arith.addf %2, %4 : vector<16x128xf32>
    %cst_5 = arith.constant 0.00999999977 : f32
    %6 = vector.broadcast %cst_5 : f32 to vector<16x128xf32>
    %7 = arith.mulf %6, %5 : vector<16x128xf32>
    %8 = arith.maximumf %5, %7 : vector<16x128xf32>
    %9 = arith.truncf %8 : vector<16x128xf32> to vector<16x128xbf16>
    %c0_6 = arith.constant 0 : index
    %c0_7 = arith.constant 0 : index
    %10 = vector.load %arg4[%c0_6, %c0_7] : memref<128x128xbf16, #tpu.memory_space<vmem>>, vector<128x128xbf16>
    %cst_8 = arith.constant dense<0.000000e+00> : vector<16x128xf32>
    %11 = tpu.matmul %9, %10, %cst_8 {dimension_numbers = #tpu.dot_dimension_numbers<[1], [0], [0], [1], [0, 0, 1, 1], [], []>} : vector<16x128xbf16>, vector<128x128xbf16>, vector<16x128xf32> -> vector<16x128xf32>
    %c0_9 = arith.constant 0 : index
    %c0_10 = arith.constant 0 : index
    %12 = vector.load %arg5[%c0_9, %c0_10] : memref<1x128xf32, #tpu.memory_space<vmem>>, vector<1x128xf32>
    %13 = vector.broadcast %12 : vector<1x128xf32> to vector<16x128xf32>
    %14 = arith.addf %11, %13 : vector<16x128xf32>
    %c0_11 = arith.constant 0 : index
    %c0_12 = arith.constant 0 : index
    %15 = vector.load %arg6[%c0_11, %c0_12] : memref<16x128xf32, #tpu.memory_space<vmem>>, vector<16x128xf32>
    tpu.vector_store %arg6[%c0_11, %c0_12], %14 {strides = array<i32>} : memref<16x128xf32, #tpu.memory_space<vmem>>, vector<16x128xf32>,
    return
  }
  func.func @transform_0(%arg0: i32) -> (i32, i32) {
    %c0_i32 = arith.constant 0 : i32
    %c0_i32_0 = arith.constant 0 : i32
    return %arg0, %c0_i32 : i32, i32
  }
  func.func @transform_1(%arg0: i32) -> (i32, i32) {
    %c0_i32 = arith.constant 0 : i32
    %c0_i32_0 = arith.constant 0 : i32
    %c0_i32_1 = arith.constant 0 : i32
    return %c0_i32, %c0_i32_0 : i32, i32
  }
  func.func @transform_2(%arg0: i32) -> (i32, i32) {
    %c0_i32 = arith.constant 0 : i32
    %c0_i32_0 = arith.constant 0 : i32
    %c0_i32_1 = arith.constant 0 : i32
    return %c0_i32, %c0_i32_0 : i32, i32
  }
  func.func @transform_3(%arg0: i32) -> (i32, i32) {
    %c0_i32 = arith.constant 0 : i32
    %c0_i32_0 = arith.constant 0 : i32
    %c0_i32_1 = arith.constant 0 : i32
    return %c0_i32, %c0_i32_0 : i32, i32
  }
  func.func @transform_4(%arg0: i32) -> (i32, i32) {
    %c0_i32 = arith.constant 0 : i32
    %c0_i32_0 = arith.constant 0 : i32
    %c0_i32_1 = arith.constant 0 : i32
    return %c0_i32, %c0_i32_0 : i32, i32
  }
  func.func @transform_5(%arg0: i32) -> (i32, i32) {
    %c0_i32 = arith.constant 0 : i32
    %c0_i32_0 = arith.constant 0 : i32
    return %arg0, %c0_i32 : i32, i32
  }
}

</mosaic_0001>

<llo_original>
// kernel: tpu_custom_call.1
$region0: #{tpu_custom_call.1}
  #allocation0 [shape = 'u32[]', space=smem, size = 0x4, offset = 0x4, fixed_abs, tag = 'smem constant byte address 0x4 - core index']
  #allocation1 [shape = 'u32[72,128]{1,0:T(1,128)}', space=vmem, size = 0x9000, scoped, tag = 'internal scratch']
  %s0 = inlined_call_operand.hbm [shape: bf16[16,128], index: 0, kind: input, shape index: {}]
  %s1 = inlined_call_operand.hbm [shape: bf16[128,128], index: 1, kind: input, shape index: {}]
  %s2 = inlined_call_operand.vmem [shape: f32[1,128], index: 2, kind: input, shape index: {}]
  %s3 = inlined_call_operand.hbm [shape: bf16[128,128], index: 3, kind: input, shape index: {}]
  %s4 = inlined_call_operand.vmem [shape: f32[1,128], index: 4, kind: input, shape index: {}]
  %s5 = inlined_call_operand.hbm [shape: f32[16,128], index: 5, kind: output, shape index: {}]
  %s6 = sld [smem:[#allocation0]]
  $region42: #{tpu_custom_call.1} parent=0
    _
  %s8 = ssub.s32 1, %s6
  %s9 = scalar_select 0, %s8, %s6
  $region1: #{tpu_custom_call.1} parent=0
    #allocation2 [shape = 'u8[4096]{0}', space=vmem, size = 0x1000, scoped, tag = 'input window, operand 0, single buffered']
    #allocation3 [shape = 's32[1]{0}', space=sflag, size = 0x4, scoped, tag = 'scoped memory for tpu_custom_call.1']
    #allocation4 [shape = 's32[1]{0}', space=sflag, size = 0x4, scoped, tag = 'scoped memory for tpu_custom_call.1']
    #allocation5 [shape = 'u8[32768]{0}', space=vmem, size = 0x8000, scoped, tag = 'input window, operand 1, single buffered']
    #allocation6 [shape = 's32[1]{0}', space=sflag, size = 0x4, scoped, tag = 'scoped memory for tpu_custom_call.1']
    #allocation7 [shape = 'u8[32768]{0}', space=vmem, size = 0x8000, scoped, tag = 'input window, operand 3, single buffered']
    #allocation8 [shape = 'u8[8192]{0}', space=vmem, size = 0x2000, scoped, tag = 'output window, operand 0, single buffered']
    %10 = vsyncpa [#allocation3], 0
    %11 = vsyncpa [#allocation6], 0
    %12 = vsyncpa [#allocation4], 0
    // Predicated region
    $region2: #{tpu_custom_call.1} parent=1 // pred_check
      _
    $region3: #{tpu_custom_call.1} parent=1 // pred_check_branch
      %14 = sbr.rel (0) target = $region5
    $region4: #{tpu_custom_call.1} parent=1 // pred_region
      %16 = vsyncadd [#allocation3], 0
      %s17 = sshll.u32 %s0, 4
      %s18 = int_to_ptr.hbm [resolvable:$true] %s17
      %s19 = sshll.u32 [#allocation2], 4
      %s20 = int_to_ptr.vmem [resolvable:$true] %s19
      %25 = dma.hbm_to_vmem [thread:$0]  %s18, 128, %s20, [#allocation3], 64, 64, 4
    $region5: #{tpu_custom_call.1} parent=1 // pred_fallthru
      _
    // Predicated region
    $region6: #{tpu_custom_call.1} parent=1 // pred_check
      _
    $region7: #{tpu_custom_call.1} parent=1 // pred_check_branch
      %27 = sbr.rel (0) target = $region9
    $region8: #{tpu_custom_call.1} parent=1 // pred_region
      %29 = vsyncadd [#allocation6], 0
      %s30 = sshll.u32 %s1, 4
      %s31 = int_to_ptr.hbm [resolvable:$true] %s30
      %s32 = sshll.u32 [#allocation5], 4
      %s33 = int_to_ptr.vmem [resolvable:$true] %s32
      %38 = dma.hbm_to_vmem [thread:$0]  %s31, 1024, %s33, [#allocation6], 64, 64, 4
    $region9: #{tpu_custom_call.1} parent=1 // pred_fallthru
      _
    // Predicated region
    $region10: #{tpu_custom_call.1} parent=1 // pred_check
      _
    $region11: #{tpu_custom_call.1} parent=1 // pred_check_branch
      %40 = sbr.rel (0) target = $region13
    $region12: #{tpu_custom_call.1} parent=1 // pred_region
      _
    $region13: #{tpu_custom_call.1} parent=1 // pred_fallthru
      _
    // Predicated region
    $region14: #{tpu_custom_call.1} parent=1 // pred_check
      _
    $region15: #{tpu_custom_call.1} parent=1 // pred_check_branch
      %42 = sbr.rel (0) target = $region17
    $region16: #{tpu_custom_call.1} parent=1 // pred_region
      %44 = vsyncadd [#allocation6], 0
      %s45 = sshll.u32 %s3, 4
      %s46 = int_to_ptr.hbm [resolvable:$true] %s45
      %s47 = sshll.u32 [#allocation7], 4
      %s48 = int_to_ptr.vmem [resolvable:$true] %s47
      %53 = dma.hbm_to_vmem [thread:$0]  %s46, 1024, %s48, [#allocation6], 64, 64, 4
    $region17: #{tpu_custom_call.1} parent=1 // pred_fallthru
      _
    // Predicated region
    $region18: #{tpu_custom_call.1} parent=1 // pred_check
      _
    $region19: #{tpu_custom_call.1} parent=1 // pred_check_branch
      %55 = sbr.rel (0) target = $region21
    $region20: #{tpu_custom_call.1} parent=1 // pred_region
      _
    $region21: #{tpu_custom_call.1} parent=1 // pred_fallthru
      _
    // Predicated region
    $region22: #{tpu_custom_call.1} parent=1 // pred_check
      _
    $region23: #{tpu_custom_call.1} parent=1 // pred_check_branch
      %57 = sbr.rel (0) target = $region25
    $region24: #{tpu_custom_call.1} parent=1 // pred_region
      %59 = dma.done [#allocation3], 128
    $region25: #{tpu_custom_call.1} parent=1 // pred_fallthru
      _
    // Predicated region
    $region26: #{tpu_custom_call.1} parent=1 // pred_check
      _
    $region27: #{tpu_custom_call.1} parent=1 // pred_check_branch
      %61 = sbr.rel (0) target = $region29
    $region28: #{tpu_custom_call.1} parent=1 // pred_region
      %63 = dma.done [#allocation6], 1024
    $region29: #{tpu_custom_call.1} parent=1 // pred_fallthru
      _
    // Predicated region
    $region30: #{tpu_custom_call.1} parent=1 // pred_check
      _
    $region31: #{tpu_custom_call.1} parent=1 // pred_check_branch
      %65 = sbr.rel (0) target = $region33
    $region32: #{tpu_custom_call.1} parent=1 // pred_region
      %67 = dma.done [#allocation6], 1024
    $region33: #{tpu_custom_call.1} parent=1 // pred_fallthru
      _
    %v68 = vld [vmem:[#allocation2] sm:$0xf]
    %v69 = vld [vmem:[#allocation2 + $0x4] sm:$0xf]
    %v70 = vld [vmem:[#allocation5] sm:$0xf]
    %v71 = vld [vmem:[#allocation5 + $0x4] sm:$0xf]
    %v72 = vld [vmem:[#allocation5 + $0x8] sm:$0xf]
    %v73 = vld [vmem:[#allocation5 + $0xc] sm:$0xf]
    %v74 = vld [vmem:[#allocation5 + $0x10] sm:$0xf]
    %v75 = vld [vmem:[#allocation5 + $0x14] sm:$0xf]
    %v76 = vld [vmem:[#allocation5 + $0x18] sm:$0xf]
    %v77 = vld [vmem:[#allocation5 + $0x1c] sm:$0xf]
    %v78 = vld [vmem:[#allocation5 + $0x20] sm:$0xf]
    %v79 = vld [vmem:[#allocation5 + $0x24] sm:$0xf]
    %v80 = vld [vmem:[#allocation5 + $0x28] sm:$0xf]
    %v81 = vld [vmem:[#allocation5 + $0x2c] sm:$0xf]
    %v82 = vld [vmem:[#allocation5 + $0x30] sm:$0xf]
    %v83 = vld [vmem:[#allocation5 + $0x34] sm:$0xf]
    %v84 = vld [vmem:[#allocation5 + $0x38] sm:$0xf]
    %v85 = vld [vmem:[#allocation5 + $0x3c] sm:$0xf]
    %v86 = vld [vmem:[%s2] sm:$0x1]
    %v88 = vperm.slane %v86, 0
    %v92 = vunpack.c.l.b16 %v68
    %v93 = vunpack.c.l.b16 %v69
    %v94 = vpack.c.b16 %v93, %v92
    %v112 = vunpack.c.l.b16 %v70
    %v113 = vunpack.c.l.b16 %v71
    %v114 = vunpack.c.l.b16 %v72
    %v115 = vunpack.c.l.b16 %v73
    %v116 = vunpack.c.l.b16 %v74
    %v117 = vunpack.c.l.b16 %v75
    %v118 = vunpack.c.l.b16 %v76
    %v119 = vunpack.c.l.b16 %v77
    %v120 = vunpack.c.l.b16 %v78
    %v121 = vunpack.c.l.b16 %v79
    %v122 = vunpack.c.l.b16 %v80
    %v123 = vunpack.c.l.b16 %v81
    %v124 = vunpack.c.l.b16 %v82
    %v125 = vunpack.c.l.b16 %v83
    %v126 = vunpack.c.l.b16 %v84
    %v127 = vunpack.c.l.b16 %v85
    %v128 = vpack.c.b16 %v113, %v112
    %v129 = vpack.c.b16 %v115, %v114
    %v130 = vpack.c.b16 %v117, %v116
    %v131 = vpack.c.b16 %v119, %v118
    %v132 = vpack.c.b16 %v121, %v120
    %v133 = vpack.c.b16 %v123, %v122
    %v134 = vpack.c.b16 %v125, %v124
    %v135 = vpack.c.b16 %v127, %v126
    %144 = vmatpush.bf16.msra.mxu0 %v135
    %145 = vmatpush.bf16.msra.mxu0 %v134
    %146 = vmatpush.bf16.msra.mxu0 %v133
    %147 = vmatpush.bf16.msra.mxu0 %v132
    %148 = vmatpush.bf16.msra.mxu0 %v131
    %149 = vmatpush.bf16.msra.mxu0 %v130
    %150 = vmatpush.bf16.msra.mxu0 %v129
    %151 = vmatpush.bf16.msra.mxu0 %v128
    %152 = vmatmul.bf16.gmra.mxu0 %v94
    %v153 = vpop.f32.mrf.mxu0
    %v154 = vadd.f32 %v88, %v153
    %v155 = vpop.f32.mrf.mxu0
    %v156 = vadd.f32 %v88, %v155
    %157 = vdwg.mxu0
    %v158 = vmul.f32 %v154, 0.01
    %v159 = vmul.f32 %v156, 0.01
    %v160 = vmax.f32 %v154, %v158
    %v161 = vmax.f32 %v156, %v159
    %v162 = vpack.c.bf16 %v161, %v160
    %v163 = vld [vmem:[#allocation7] sm:$0xf]
    %v164 = vld [vmem:[#allocation7 + $0x4] sm:$0xf]
    %v165 = vld [vmem:[#allocation7 + $0x8] sm:$0xf]
    %v166 = vld [vmem:[#allocation7 + $0xc] sm:$0xf]
    %v167 = vld [vmem:[#allocation7 + $0x10] sm:$0xf]
    %v168 = vld [vmem:[#allocation7 + $0x14] sm:$0xf]
    %v169 = vld [vmem:[#allocation7 + $0x18] sm:$0xf]
    %v170 = vld [vmem:[#allocation7 + $0x1c] sm:$0xf]
    %v171 = vld [vmem:[#allocation7 + $0x20] sm:$0xf]
    %v172 = vld [vmem:[#allocation7 + $0x24] sm:$0xf]
    %v173 = vld [vmem:[#allocation7 + $0x28] sm:$0xf]
    %v174 = vld [vmem:[#allocation7 + $0x2c] sm:$0xf]
    %v175 = vld [vmem:[#allocation7 + $0x30] sm:$0xf]
    %v176 = vld [vmem:[#allocation7 + $0x34] sm:$0xf]
    %v177 = vld [vmem:[#allocation7 + $0x38] sm:$0xf]
    %v178 = vld [vmem:[#allocation7 + $0x3c] sm:$0xf]
    %v179 = vld [vmem:[%s4] sm:$0x1]
    %v181 = vperm.slane %v179, 0
    %v199 = vunpack.c.l.b16 %v163
    %v200 = vunpack.c.l.b16 %v164
    %v201 = vunpack.c.l.b16 %v165
    %v202 = vunpack.c.l.b16 %v166
    %v203 = vunpack.c.l.b16 %v167
    %v204 = vunpack.c.l.b16 %v168
    %v205 = vunpack.c.l.b16 %v169
    %v206 = vunpack.c.l.b16 %v170
    %v207 = vunpack.c.l.b16 %v171
    %v208 = vunpack.c.l.b16 %v172
    %v209 = vunpack.c.l.b16 %v173
    %v210 = vunpack.c.l.b16 %v174
    %v211 = vunpack.c.l.b16 %v175
    %v212 = vunpack.c.l.b16 %v176
    %v213 = vunpack.c.l.b16 %v177
    %v214 = vunpack.c.l.b16 %v178
    %v215 = vpack.c.b16 %v200, %v199
    %v216 = vpack.c.b16 %v202, %v201
    %v217 = vpack.c.b16 %v204, %v203
    %v218 = vpack.c.b16 %v206, %v205
    %v219 = vpack.c.b16 %v208, %v207
    %v220 = vpack.c.b16 %v210, %v209
    %v221 = vpack.c.b16 %v212, %v211
    %v222 = vpack.c.b16 %v214, %v213
    %231 = vmatpush.bf16.msra.mxu0 %v222
    %232 = vmatpush.bf16.msra.mxu0 %v221
    %233 = vmatpush.bf16.msra.mxu0 %v220
    %234 = vmatpush.bf16.msra.mxu0 %v219
    %235 = vmatpush.bf16.msra.mxu0 %v218
    %236 = vmatpush.bf16.msra.mxu0 %v217
    %237 = vmatpush.bf16.msra.mxu0 %v216
    %238 = vmatpush.bf16.msra.mxu0 %v215
    %239 = vmatmul.bf16.gmra.mxu0 %v162
    %v240 = vpop.f32.mrf.mxu0
    %v241 = vadd.f32 %v181, %v240
    %v242 = vpop.f32.mrf.mxu0
    %v243 = vadd.f32 %v181, %v242
    %244 = vdwg.mxu0
    %245 = vst [vmem:[#allocation8] sm:$0xff] %v241
    %246 = vst [vmem:[#allocation8 + $0x8] sm:$0xff] %v243
    // Predicated region
    $region34: #{tpu_custom_call.1} parent=1 // pred_check
      _
    $region35: #{tpu_custom_call.1} parent=1 // pred_check_branch
      %248 = sbr.rel (0) target = $region37
    $region36: #{tpu_custom_call.1} parent=1 // pred_region
      %250 = vsyncadd [#allocation4], 0
      %s251 = sshll.u32 [#allocation8], 4
      %s252 = int_to_ptr.vmem [resolvable:$true] %s251
      %s253 = sshll.u32 %s5, 4
      %s254 = int_to_ptr.hbm [resolvable:$true] %s253
      %259 = dma.vmem_to_hbm [thread:$0]  %s252, 256, %s254, [#allocation4], 128, 128, 8
    $region37: #{tpu_custom_call.1} parent=1 // pred_fallthru
      _
    // Predicated region
    $region38: #{tpu_custom_call.1} parent=1 // pred_check
      _
    $region39: #{tpu_custom_call.1} parent=1 // pred_check_branch
      %261 = sbr.rel (0) target = $region41
    $region40: #{tpu_custom_call.1} parent=1 // pred_region
      %263 = dma.done [#allocation4], 256
    $region41: #{tpu_custom_call.1} parent=1 // pred_fallthru
      _
    %264 = vsyncpa [#allocation3], 1
    %265 = vsyncpa [#allocation6], 1
    %266 = vsyncpa [#allocation4], 1

</llo_original>
